<compile_context>
chip_gen: v6e
topology: v6e:2x2x1
jax: 0.10.0
libtpu: 0.0.40
codegen_flags: <defaults>
</compile_context>

<pallas_src>
import functools

import jax
import jax.numpy as jnp
import numpy as np
from jax import lax
from jax.experimental import pallas as pl
from jax.experimental.pallas import tpu as pltpu


_TARGET_TILE_BYTES = 2 * 1024 * 1024  # ~2 MiB per streamed input tile per grid step


def _sse_partial_kernel(yhat_ref, y_ref, out_ref, acc_ref, *, rows, need_mask):
    """Per-core partial sum of squared differences over row blocks."""
    i = pl.program_id(1)  # inner ("arbitrary") reduction axis

    @pl.when(i == 0)
    def _init():
        acc_ref[...] = jnp.zeros_like(acc_ref)

    tile_rows, lane = yhat_ref.shape

    # Hot loop: pure VALU (sub / mul / select / add); HBM-bound overall.
    d = yhat_ref[...].astype(jnp.float32) - y_ref[...].astype(jnp.float32)
    sq = d * d
    if need_mask:
        # Mask rows that are out of bounds (ragged last block) or that belong
        # to a clamped/duplicated block of an imbalanced core split.
        logical_block = pl.program_id(0) * pl.num_programs(1) + i
        row_idx = (logical_block * tile_rows
                   + lax.broadcasted_iota(jnp.int32, (tile_rows, 1), 0))
        sq = jnp.where(row_idx < rows, sq, 0.0)

    # Small (1, lane) accumulator: per-step sublane reduction (VALU adds).
    acc_ref[...] += jnp.sum(sq, axis=0, keepdims=True)

    @pl.when(i == pl.num_programs(1) - 1)
    def _finalize():
        partial = jnp.sum(acc_ref[...], axis=(0, 1), keepdims=True)  # (1, 1)
        out_ref[...] = jnp.broadcast_to(partial, out_ref.shape)      # lane-dense store


def pcaae_loss(y_hat, y, z, lambda_cov=0.01):
    """Returns (total_loss, recon_loss, covariance_loss) as float32 scalars."""
    n = int(np.prod(y_hat.shape))
    itemsize = jnp.dtype(y_hat.dtype).itemsize

    yh = y_hat.reshape(-1)  # contiguous reshape: free, native dtype kept
    yy = y.reshape(-1)

    # Lane width: largest multiple of 128 (<= 1024) dividing n -> zero padding.
    lane = 0
    for k in range(8, 0, -1):
        if n % (128 * k) == 0:
            lane = 128 * k
            break
    if lane == 0:
        # TODO(synk): rare ragged case (n % 128 != 0) still pays a full-copy
        # pad; a 1D-block kernel with an in-kernel flat-index mask would
        # remove it entirely.
        lane = 128
        pad = (-n) % 128
        yh = jnp.pad(yh, (0, pad))
        yy = jnp.pad(yy, (0, pad))
    n_padded = yh.shape[0]
    rows = n_padded // lane
    yh2 = yh.reshape(rows, lane)
    yy2 = yy.reshape(rows, lane)

    # Row tile: dtype-native sublane multiple, ~2 MiB per input tile.
    sub_mult = max(8, 32 // itemsize)  # 8 for f32, 16 for bf16, 32 for int8/fp8
    target_rows = max(sub_mult,
                      (_TARGET_TILE_BYTES // (lane * itemsize)) // sub_mult * sub_mult)
    tile_rows = rows if rows <= target_rows else target_rows

    total_blocks = -(-rows // tile_rows)
    split = 2 if total_blocks >= 2 else 1        # v7x megacore: one shard per TensorCore
    bpc = -(-total_blocks // split)              # blocks per core
    exact = (rows % tile_rows == 0) and (total_blocks == split * bpc)

    def in_index_map(c, i):
        blk = c * bpc + i
        if not exact:
            # Duplicated overflow blocks re-read valid data; masked to 0 in-kernel.
            blk = jnp.minimum(blk, total_blocks - 1)
        return (blk, 0)

    kernel = functools.partial(_sse_partial_kernel, rows=rows, need_mask=not exact)

    cost = pl.CostEstimate(
        flops=int(3 * n_padded),
        transcendentals=0,
        bytes_accessed=int(2 * n_padded * itemsize + split * 128 * 4),
    )

    partials = pl.pallas_call(
        kernel,
        out_shape=jax.ShapeDtypeStruct((split, 128), jnp.float32),
        grid=(split, bpc),
        in_specs=[
            pl.BlockSpec((tile_rows, lane), in_index_map),
            pl.BlockSpec((tile_rows, lane), in_index_map),
        ],
        out_specs=pl.BlockSpec((1, 128), lambda c, i: (c, 0)),
        scratch_shapes=[pltpu.VMEM((1, lane), jnp.float32)],
        compiler_params=pltpu.CompilerParams(
            dimension_semantics=("parallel", "arbitrary"),
            vmem_limit_bytes=32 * 1024 * 1024,
        ),
        cost_estimate=cost,
    )(yh2, yy2)

    recon = jnp.sum(partials[:, 0]) / n

    # Covariance loss on z: O(B*D^2), runs once -> plain XLA in the wrapper.
    z32 = z.astype(jnp.float32)
    b = z.shape[0]
    zc = z32 - jnp.mean(z32, axis=0, keepdims=True)
    cov = (zc.T @ zc) / b
    cov_loss = jnp.sum(cov * cov) - jnp.sum(jnp.diagonal(cov) ** 2)

    total = recon + lambda_cov * cov_loss
    return total, recon, cov_loss


def _reference(y_hat, y, z, lambda_cov=0.01):
    y_hat = y_hat.astype(jnp.float32)
    y = y.astype(jnp.float32)
    z = z.astype(jnp.float32)
    recon = jnp.mean((y_hat - y) ** 2)
    b = z.shape[0]
    zc = z - jnp.mean(z, axis=0, keepdims=True)
    cov = zc.T @ zc / b
    cov_loss = jnp.sum(cov ** 2) - jnp.sum(jnp.diagonal(cov) ** 2)
    return recon + lambda_cov * cov_loss, recon, cov_loss


if __name__ == "__main__":
    key = jax.random.PRNGKey(0)
    k1, k2, k3 = jax.random.split(key, 3)

    batch, channels, spatial, latent = 2, 4, 16, 8
    y_hat = jax.random.normal(k1, (batch, channels, spatial, spatial), jnp.float32)
    y = jax.random.normal(k2, (batch, channels, spatial, spatial), jnp.float32)
    z = jax.random.normal(k3, (batch, latent), jnp.float32)

    total, recon, cov = pcaae_loss(y_hat, y, z, lambda_cov=0.01)
    jax.block_until_ready((total, recon, cov))

    ref_total, ref_recon, ref_cov = _reference(y_hat, y, z, lambda_cov=0.01)
    np.testing.assert_allclose(np.asarray(total), np.asarray(ref_total), rtol=1e-5, atol=1e-5)
    np.testing.assert_allclose(np.asarray(recon), np.asarray(ref_recon), rtol=1e-5, atol=1e-5)
    np.testing.assert_allclose(np.asarray(cov), np.asarray(ref_cov), rtol=1e-5, atol=1e-5)

    print("KERNEL_OK")
</pallas_src>

<mosaic_0001>
module attributes {stable_mosaic.version = 11 : i64} {
  func.func @_sse_partial_kernel(%arg0: i32, %arg1: i32, %arg2: memref<2x1024xf32, #tpu.memory_space<vmem>>, %arg3: memref<2x1024xf32, #tpu.memory_space<vmem>>, %arg4: memref<1x128xf32, #tpu.memory_space<vmem>>, %arg5: memref<1x1024xf32, #tpu.memory_space<vmem>>) attributes {dimension_semantics = [#tpu.dimension_semantics<parallel>, #tpu.dimension_semantics<arbitrary>], iteration_bounds = array<i64: 1, 1>, scalar_prefetch = 0 : i64, scratch_operands = 1 : i64, tpu.core_type = #tpu.core_type<tc>, window_params = [{transform_indices = @transform_0, window_bounds = array<i64: 2, 1024>}, {transform_indices = @transform_1, window_bounds = array<i64: 2, 1024>}, {transform_indices = @transform_2, window_bounds = array<i64: 1, 128>}]} {
    %c0_i32 = arith.constant 0 : i32
    %0 = arith.cmpi eq, %arg1, %c0_i32 : i32
    %1 = arith.extui %0 : i1 to i32
    %c0_i32_0 = arith.constant 0 : i32
    %2 = arith.cmpi ne, %1, %c0_i32_0 : i32
    scf.if %2 {
      %cst_10 = arith.constant 0.000000e+00 : f32
      %15 = vector.broadcast %cst_10 : f32 to vector<1x1024xf32>
      %c0_11 = arith.constant 0 : index
      %c0_12 = arith.constant 0 : index
      %16 = vector.load %arg5[%c0_11, %c0_12] : memref<1x1024xf32, #tpu.memory_space<vmem>>, vector<1x1024xf32>
      tpu.vector_store %arg5[%c0_11, %c0_12], %15 {strides = array<i32>} : memref<1x1024xf32, #tpu.memory_space<vmem>>, vector<1x1024xf32>,
    } else {
    }
    %c0 = arith.constant 0 : index
    %c0_1 = arith.constant 0 : index
    %3 = vector.load %arg2[%c0, %c0_1] : memref<2x1024xf32, #tpu.memory_space<vmem>>, vector<2x1024xf32>
    %c0_2 = arith.constant 0 : index
    %c0_3 = arith.constant 0 : index
    %4 = vector.load %arg3[%c0_2, %c0_3] : memref<2x1024xf32, #tpu.memory_space<vmem>>, vector<2x1024xf32>
    %5 = arith.subf %3, %4 : vector<2x1024xf32>
    %6 = arith.mulf %5, %5 : vector<2x1024xf32>
    %c0_4 = arith.constant 0 : index
    %c0_5 = arith.constant 0 : index
    %7 = vector.load %arg5[%c0_4, %c0_5] : memref<1x1024xf32, #tpu.memory_space<vmem>>, vector<1x1024xf32>
    %cst = arith.constant dense<0.000000e+00> : vector<1024xf32>
    %8 = vector.multi_reduction <add>, %6, %cst [0] : vector<2x1024xf32> to vector<1024xf32>
    %9 = vector.shape_cast %8 : vector<1024xf32> to vector<1x1024xf32>
    %10 = arith.addf %7, %9 : vector<1x1024xf32>
    %c0_6 = arith.constant 0 : index
    %c0_7 = arith.constant 0 : index
    %11 = vector.load %arg5[%c0_6, %c0_7] : memref<1x1024xf32, #tpu.memory_space<vmem>>, vector<1x1024xf32>
    tpu.vector_store %arg5[%c0_6, %c0_7], %10 {strides = array<i32>} : memref<1x1024xf32, #tpu.memory_space<vmem>>, vector<1x1024xf32>,
    %c0_i32_8 = arith.constant 0 : i32
    %12 = arith.cmpi eq, %arg1, %c0_i32_8 : i32
    %13 = arith.extui %12 : i1 to i32
    %c0_i32_9 = arith.constant 0 : i32
    %14 = arith.cmpi ne, %13, %c0_i32_9 : i32
    scf.if %14 {
      %c0_10 = arith.constant 0 : index
      %c0_11 = arith.constant 0 : index
      %15 = vector.load %arg5[%c0_10, %c0_11] : memref<1x1024xf32, #tpu.memory_space<vmem>>, vector<1x1024xf32>
      %16 = vector.shape_cast %15 : vector<1x1024xf32> to vector<1x1x1024xf32>
      %cst_12 = arith.constant dense<0.000000e+00> : vector<1xf32>
      %17 = vector.multi_reduction <add>, %16, %cst_12 [1, 2] : vector<1x1x1024xf32> to vector<1xf32>
      %18 = vector.shape_cast %17 : vector<1xf32> to vector<1x1x1xf32>
      %19 = vector.extract %18[0, 0, 0] : f32 from vector<1x1x1xf32>
      %20 = vector.broadcast %19 : f32 to vector<1x1xf32>
      %21 = vector.shape_cast %20 : vector<1x1xf32> to vector<1x1xf32>
      %22 = vector.broadcast %21 : vector<1x1xf32> to vector<1x128xf32>
      %c0_13 = arith.constant 0 : index
      %c0_14 = arith.constant 0 : index
      %23 = vector.load %arg4[%c0_13, %c0_14] : memref<1x128xf32, #tpu.memory_space<vmem>>, vector<1x128xf32>
      tpu.vector_store %arg4[%c0_13, %c0_14], %22 {strides = array<i32>} : memref<1x128xf32, #tpu.memory_space<vmem>>, vector<1x128xf32>,
    } else {
    }
    return
  }
  func.func @transform_0(%arg0: i32, %arg1: i32) -> (i32, i32) {
    %c1_i32 = arith.constant 1 : i32
    %0 = arith.muli %arg0, %c1_i32 : i32
    %1 = arith.addi %0, %arg1 : i32
    %c0_i32 = arith.constant 0 : i32
    %c0_i32_0 = arith.constant 0 : i32
    return %1, %c0_i32 : i32, i32
  }
  func.func @transform_1(%arg0: i32, %arg1: i32) -> (i32, i32) {
    %c1_i32 = arith.constant 1 : i32
    %0 = arith.muli %arg0, %c1_i32 : i32
    %1 = arith.addi %0, %arg1 : i32
    %c0_i32 = arith.constant 0 : i32
    %c0_i32_0 = arith.constant 0 : i32
    return %1, %c0_i32 : i32, i32
  }
  func.func @transform_2(%arg0: i32, %arg1: i32) -> (i32, i32) {
    %c0_i32 = arith.constant 0 : i32
    %c0_i32_0 = arith.constant 0 : i32
    return %arg0, %c0_i32 : i32, i32
  }
}

</mosaic_0001>

<llo_original>
// kernel: tpu_custom_call.1
$region0: #{tpu_custom_call.1}
  #allocation0 [shape = 'u32[]', space=smem, size = 0x4, offset = 0x4, fixed_abs, tag = 'smem constant byte address 0x4 - core index']
  #allocation1 [shape = 'u32[144,128]{1,0:T(1,128)}', space=vmem, size = 0x12000, scoped, tag = 'internal scratch']
  #allocation2 [shape = 'f32[1,1024]{1,0:T(1,128)}', space=vmem, size = 0x1000, scoped, tag = 'scratch operand']
  %s0 = inlined_call_operand.hbm [shape: f32[2,1024], index: 0, kind: input, shape index: {}]
  %s1 = inlined_call_operand.hbm [shape: f32[2,1024], index: 1, kind: input, shape index: {}]
  %s2 = inlined_call_operand.hbm [shape: f32[1,128], index: 2, kind: output, shape index: {}]
  %s3 = sld [smem:[#allocation0]]
  $region34: #{tpu_custom_call.1} parent=0
    _
  %s5 = ssub.s32 1, %s3
  %s6 = scalar_select 0, %s5, %s3
  $region1: #{tpu_custom_call.1} parent=0
    #allocation3 [shape = 'u8[8192]{0}', space=vmem, size = 0x2000, scoped, tag = 'input window, operand 0, single buffered']
    #allocation4 [shape = 's32[1]{0}', space=sflag, size = 0x4, scoped, tag = 'scoped memory for tpu_custom_call.1']
    #allocation5 [shape = 's32[1]{0}', space=sflag, size = 0x4, scoped, tag = 'scoped memory for tpu_custom_call.1']
    #allocation6 [shape = 'u8[8192]{0}', space=vmem, size = 0x2000, scoped, tag = 'input window, operand 1, single buffered']
    #allocation7 [shape = 's32[1]{0}', space=sflag, size = 0x4, scoped, tag = 'scoped memory for tpu_custom_call.1']
    #allocation8 [shape = 'u8[512]{0}', space=vmem, size = 0x400, scoped, tag = 'output window, operand 0, single buffered']
    %7 = vsyncpa [#allocation4], 0
    %8 = vsyncpa [#allocation7], 0
    %9 = vsyncpa [#allocation5], 0
    // Predicated region
    $region2: #{tpu_custom_call.1} parent=1 // pred_check
      _
    $region3: #{tpu_custom_call.1} parent=1 // pred_check_branch
      %11 = sbr.rel (0) target = $region5
    $region4: #{tpu_custom_call.1} parent=1 // pred_region
      %s12 = sadd.s32 0, 0
      %s14 = ssub.s32 256, 256
      %15 = vsyncadd [#allocation4], %s14
      %s16 = smul.addr %s12, 8
      %s17 = smul.addr %s16, 32
      %s18 = scalar_lea.hbm %s0, %s17
      %s20 = sshll.u32 [#allocation3], 4
      %s21 = int_to_ptr.vmem [resolvable:$true] %s20
      %23 = dma.hbm_to_vmem [thread:$0]  %s18, 256, %s21, [#allocation4]
    $region5: #{tpu_custom_call.1} parent=1 // pred_fallthru
      _
    // Predicated region
    $region6: #{tpu_custom_call.1} parent=1 // pred_check
      _
    $region7: #{tpu_custom_call.1} parent=1 // pred_check_branch
      %25 = sbr.rel (0) target = $region9
    $region8: #{tpu_custom_call.1} parent=1 // pred_region
      %s26 = sadd.s32 0, 0
      %s28 = ssub.s32 256, 256
      %29 = vsyncadd [#allocation7], %s28
      %s30 = smul.addr %s26, 8
      %s31 = smul.addr %s30, 32
      %s32 = scalar_lea.hbm %s1, %s31
      %s34 = sshll.u32 [#allocation6], 4
      %s35 = int_to_ptr.vmem [resolvable:$true] %s34
      %37 = dma.hbm_to_vmem [thread:$0]  %s32, 256, %s35, [#allocation7]
    $region9: #{tpu_custom_call.1} parent=1 // pred_fallthru
      _
    // Predicated region
    $region10: #{tpu_custom_call.1} parent=1 // pred_check
      _
    $region11: #{tpu_custom_call.1} parent=1 // pred_check_branch
      %39 = sbr.rel (0) target = $region13
    $region12: #{tpu_custom_call.1} parent=1 // pred_region
      %40 = dma.done [#allocation4], 256
    $region13: #{tpu_custom_call.1} parent=1 // pred_fallthru
      _
    // Predicated region
    $region14: #{tpu_custom_call.1} parent=1 // pred_check
      _
    $region15: #{tpu_custom_call.1} parent=1 // pred_check_branch
      %42 = sbr.rel (0) target = $region17
    $region16: #{tpu_custom_call.1} parent=1 // pred_region
      %43 = dma.done [#allocation7], 256
    $region17: #{tpu_custom_call.1} parent=1 // pred_fallthru
      _
    %s44 = sadd.s32 0, 0
    %s45 = sadd.s32 0, 0
    %p46 = scmp.eq.s32.totalorder 0, 0
    // Predicated region
    $region18: #{tpu_custom_call.1} parent=1 // pred_check
      %p47 = pneg %p46
    $region19: #{tpu_custom_call.1} parent=1 // pred_check_branch
      %49 = sbr.rel (%p47) target = $region21
    $region20: #{tpu_custom_call.1} parent=1 // pred_region
      %50 = vst [vmem:[#allocation2] sm:$0xff] 0.0
    $region21: #{tpu_custom_call.1} parent=1 // pred_fallthru
      _
    %v51 = vld [vmem:[#allocation3] sm:$0xff]
    %v52 = vld [vmem:[#allocation3 + $0x8] sm:$0xff]
    %v53 = vld [vmem:[#allocation6] sm:$0xff]
    %v54 = vld [vmem:[#allocation6 + $0x8] sm:$0xff]
    %v55 = vsub.f32 %v51, %v53
    %v56 = vsub.f32 %v52, %v54
    %v57 = vmul.f32 %v55, %v55
    %v58 = vmul.f32 %v56, %v56
    %v59 = vld [vmem:[#allocation2] sm:$0xff]
    %v62 = vcombine.high %v57, %v57
    %v64 = vunpack.c.l.s4 1983009808
    %v65 = vunpack.c.0.s8 %v64
    %v66 = vlaneseq
    %v67 = vshrl.u32 %v66, 7
    %v68 = vsub.s32 %v65, %v67
    %v69 = vrot.slane %v57, %v68
    %v71 = vunpack.c.l.s4 1983009808
    %v72 = vunpack.c.0.s8 %v71
    %v73 = vlaneseq
    %v74 = vshrl.u32 %v73, 7
    %v75 = vsub.s32 %v72, %v74
    %v76 = vrot.slane %v62, %v75
    %v77 = vcombine.high %v69, %v69
    %v78 = vcombine.high %v76, %v76
    %v79 = vcombine.high %v58, %v58
    %v81 = vunpack.c.l.s4 1983009808
    %v82 = vunpack.c.0.s8 %v81
    %v83 = vlaneseq
    %v84 = vshrl.u32 %v83, 7
    %v85 = vsub.s32 %v82, %v84
    %v86 = vrot.slane %v58, %v85
    %v88 = vunpack.c.l.s4 1983009808
    %v89 = vunpack.c.0.s8 %v88
    %v90 = vlaneseq
    %v91 = vshrl.u32 %v90, 7
    %v92 = vsub.s32 %v89, %v91
    %v93 = vrot.slane %v79, %v92
    %v94 = vcombine.high %v86, %v86
    %v95 = vcombine.high %v93, %v93
    %vm104 = vcmask 1041408
    %v105 = vsel %vm104, %v69, 0.0
    %v106 = vrot.slane %v105, 4
    %v107 = vadd.f32 %v105, %v106
    %v108 = vrot.slane %v107, 2
    %v109 = vadd.f32 %v107, %v108
    %v110 = vrot.slane %v109, 1
    %v111 = vadd.f32 %v109, %v110
    %v112 = vsel %vm104, %v77, 0.0
    %v113 = vrot.slane %v112, 4
    %v114 = vadd.f32 %v112, %v113
    %v115 = vrot.slane %v114, 2
    %v116 = vadd.f32 %v114, %v115
    %v117 = vrot.slane %v116, 1
    %v118 = vadd.f32 %v116, %v117
    %v119 = vsel %vm104, %v76, 0.0
    %v120 = vrot.slane %v119, 4
    %v121 = vadd.f32 %v119, %v120
    %v122 = vrot.slane %v121, 2
    %v123 = vadd.f32 %v121, %v122
    %v124 = vrot.slane %v123, 1
    %v125 = vadd.f32 %v123, %v124
    %v126 = vsel %vm104, %v78, 0.0
    %v127 = vrot.slane %v126, 4
    %v128 = vadd.f32 %v126, %v127
    %v129 = vrot.slane %v128, 2
    %v130 = vadd.f32 %v128, %v129
    %v131 = vrot.slane %v130, 1
    %v132 = vadd.f32 %v130, %v131
    %v133 = vsel %vm104, %v86, 0.0
    %v134 = vrot.slane %v133, 4
    %v135 = vadd.f32 %v133, %v134
    %v136 = vrot.slane %v135, 2
    %v137 = vadd.f32 %v135, %v136
    %v138 = vrot.slane %v137, 1
    %v139 = vadd.f32 %v137, %v138
    %v140 = vsel %vm104, %v94, 0.0
    %v141 = vrot.slane %v140, 4
    %v142 = vadd.f32 %v140, %v141
    %v143 = vrot.slane %v142, 2
    %v144 = vadd.f32 %v142, %v143
    %v145 = vrot.slane %v144, 1
    %v146 = vadd.f32 %v144, %v145
    %v147 = vsel %vm104, %v93, 0.0
    %v148 = vrot.slane %v147, 4
    %v149 = vadd.f32 %v147, %v148
    %v150 = vrot.slane %v149, 2
    %v151 = vadd.f32 %v149, %v150
    %v152 = vrot.slane %v151, 1
    %v153 = vadd.f32 %v151, %v152
    %v154 = vsel %vm104, %v95, 0.0
    %v155 = vrot.slane %v154, 4
    %v156 = vadd.f32 %v154, %v155
    %v157 = vrot.slane %v156, 2
    %v158 = vadd.f32 %v156, %v157
    %v159 = vrot.slane %v158, 1
    %v160 = vadd.f32 %v158, %v159
    %v169 = vcombine.low %v111, %v118
    %v170 = vcombine.low %v125, %v132
    %v171 = vcombine.low %v139, %v146
    %v172 = vcombine.low %v153, %v160
    %v174 = vunpack.c.l.s4 1966171168
    %v175 = vunpack.c.0.s8 %v174
    %v176 = vlaneseq
    %v177 = vshrl.u32 %v176, 7
    %v178 = vsub.s32 %v175, %v177
    %v179 = vrot.slane %v169, %v178
    %v181 = vunpack.c.l.s4 1966171168
    %v182 = vunpack.c.0.s8 %v181
    %v183 = vlaneseq
    %v184 = vshrl.u32 %v183, 7
    %v185 = vsub.s32 %v182, %v184
    %v186 = vrot.slane %v170, %v185
    %v188 = vunpack.c.l.s4 1966171168
    %v189 = vunpack.c.0.s8 %v188
    %v190 = vlaneseq
    %v191 = vshrl.u32 %v190, 7
    %v192 = vsub.s32 %v189, %v191
    %v193 = vrot.slane %v171, %v192
    %v195 = vunpack.c.l.s4 1966171168
    %v196 = vunpack.c.0.s8 %v195
    %v197 = vlaneseq
    %v198 = vshrl.u32 %v197, 7
    %v199 = vsub.s32 %v196, %v198
    %v200 = vrot.slane %v172, %v199
    %v201 = vcombine.low %v179, %v186
    %v202 = vcombine.low %v193, %v200
    %v204 = vunpack.c.l.s4 1966171168
    %v205 = vunpack.c.0.s8 %v204
    %v206 = vlaneseq
    %v207 = vshrl.u32 %v206, 7
    %v208 = vsub.s32 %v205, %v207
    %v209 = vrot.slane %v201, %v208
    %v211 = vunpack.c.l.s4 1966171168
    %v212 = vunpack.c.0.s8 %v211
    %v213 = vlaneseq
    %v214 = vshrl.u32 %v213, 7
    %v215 = vsub.s32 %v212, %v214
    %v216 = vrot.slane %v202, %v215
    %v217 = vcombine.low %v209, %v216
    %v219 = vadd.f32 %v59, %v217
    %220 = vst [vmem:[#allocation2] sm:$0xff] %v219
    // Predicated region
    $region22: #{tpu_custom_call.1} parent=1 // pred_check
      %p221 = pneg %p46
    $region23: #{tpu_custom_call.1} parent=1 // pred_check_branch
      %223 = sbr.rel (%p221) target = $region25
    $region24: #{tpu_custom_call.1} parent=1 // pred_region
      %v224 = vld [vmem:[#allocation2] sm:$0xff]
      %v226 = vlaneseq
      %v227 = vshrl.u32 %v226, 7
      %v228 = vsub.s32 0, %v227
      %v229 = vrot.slane %v224, %v228
      %v230 = vlaneseq
      %v231 = vshrl.u32 %v230, 7
      %v232 = vsub.s32 1, %v231
      %v233 = vrot.slane %v224, %v232
      %v234 = vlaneseq
      %v235 = vshrl.u32 %v234, 7
      %v236 = vsub.s32 2, %v235
      %v237 = vrot.slane %v224, %v236
      %v238 = vlaneseq
      %v239 = vshrl.u32 %v238, 7
      %v240 = vsub.s32 3, %v239
      %v241 = vrot.slane %v224, %v240
      %v242 = vlaneseq
      %v243 = vshrl.u32 %v242, 7
      %v244 = vsub.s32 4, %v243
      %v245 = vrot.slane %v224, %v244
      %v246 = vlaneseq
      %v247 = vshrl.u32 %v246, 7
      %v248 = vsub.s32 5, %v247
      %v249 = vrot.slane %v224, %v248
      %v250 = vlaneseq
      %v251 = vshrl.u32 %v250, 7
      %v252 = vsub.s32 6, %v251
      %v253 = vrot.slane %v224, %v252
      %v254 = vlaneseq
      %v255 = vshrl.u32 %v254, 7
      %v256 = vsub.s32 7, %v255
      %v257 = vrot.slane %v224, %v256
      %vm266 = vcmask 1040384
      %v267 = vsel %vm266, %v229, 0.0
      %v268 = vsel %vm266, %v233, 0.0
      %v269 = vadd.f32 %v267, %v268
      %v270 = vsel %vm266, %v237, 0.0
      %v271 = vadd.f32 %v269, %v270
      %v272 = vsel %vm266, %v241, 0.0
      %v273 = vadd.f32 %v271, %v272
      %v274 = vsel %vm266, %v245, 0.0
      %v275 = vadd.f32 %v273, %v274
      %v276 = vsel %vm266, %v249, 0.0
      %v277 = vadd.f32 %v275, %v276
      %v278 = vsel %vm266, %v253, 0.0
      %v279 = vadd.f32 %v277, %v278
      %v280 = vsel %vm266, %v257, 0.0
      %v281 = vadd.f32 %v279, %v280
      %282 = vadd.xlane.f32.xlu0 %v281
      %v283 = vpop.xlane.xlu0 %282
      %v284 = vrot.slane %v283, 4
      %v285 = vadd.f32 %v283, %v284
      %v286 = vrot.slane %v285, 2
      %v287 = vadd.f32 %v285, %v286
      %v288 = vrot.slane %v287, 1
      %v289 = vadd.f32 %v287, %v288
      %s290 = vtos %v289
      %v291 = vstv %s290
      %292 = vst [vmem:[#allocation8] sm:$0x1] %v291
    $region25: #{tpu_custom_call.1} parent=1 // pred_fallthru
      _
    // Predicated region
    $region26: #{tpu_custom_call.1} parent=1 // pred_check
      _
    $region27: #{tpu_custom_call.1} parent=1 // pred_check_branch
      %294 = sbr.rel (0) target = $region29
    $region28: #{tpu_custom_call.1} parent=1 // pred_region
      %s296 = ssub.s32 16, 16
      %297 = vsyncadd [#allocation5], %s296
      %s299 = sshll.u32 [#allocation8], 4
      %s300 = int_to_ptr.vmem [resolvable:$true] %s299
      %302 = dma.vmem_to_hbm [thread:$0]  %s300, 16, %s2, [#allocation5]
    $region29: #{tpu_custom_call.1} parent=1 // pred_fallthru
      _
    // Predicated region
    $region30: #{tpu_custom_call.1} parent=1 // pred_check
      _
    $region31: #{tpu_custom_call.1} parent=1 // pred_check_branch
      %304 = sbr.rel (0) target = $region33
    $region32: #{tpu_custom_call.1} parent=1 // pred_region
      %305 = dma.done [#allocation5], 16
    $region33: #{tpu_custom_call.1} parent=1 // pred_fallthru
      _
    %306 = vsyncpa [#allocation4], 1
    %307 = vsyncpa [#allocation7], 1
    %308 = vsyncpa [#allocation5], 1

</llo_original>
